<compile_context>
chip_gen: v7x
topology: tpu7x:2x2x1
jax: 0.10.0
libtpu: 0.0.40
codegen_flags: <defaults>
</compile_context>

<pallas_src>
import functools

import jax
import jax.numpy as jnp
from jax.experimental import pallas as pl
from jax.experimental.pallas import tpu as pltpu


def _ssp_kernel(p_ref, t_ref, o_ref, *, eps, w, tb, w_even):
    """One grid step == TB batch samples.

    Block shapes: p_ref / t_ref : (TB, C*H, W)   (W on the lane axis)
                  o_ref         : (1, 1, TB)     (TB on the lane axis)
    """
    inv_w = jnp.float32(1.0 / w)
    lane = jax.lax.broadcasted_iota(jnp.int32, (1, tb), 1)        # output lanes
    if w_even:
        par = jax.lax.broadcasted_iota(jnp.int32, (1, w), 1) % 2
        sgn = jnp.where(par == 0, jnp.float32(1.0), jnp.float32(-1.0))  # (-1)**w

    out = jnp.zeros((1, tb), jnp.float32)
    for i in range(tb):                       # TB is small & static -> unrolled
        p = p_ref[i].astype(jnp.float32)      # (C*H, W)
        t = t_ref[i].astype(jnp.float32)
        d = p - t                             # single shared difference pass

        # k2 = 0 column (row sums) and, for even W, Nyquist column
        # (alternating row sums).  Difference stats reused, not recomputed.
        sp = jnp.sum(p, axis=1, keepdims=True)        # (C*H, 1)
        st = jnp.sum(t, axis=1, keepdims=True)
        sd = sp - st
        if w_even:
            ap = jnp.sum(p * sgn, axis=1, keepdims=True)
            at = jnp.sum(t * sgn, axis=1, keepdims=True)
            ad = ap - at
        else:
            ap = at = ad = None

        def energy(x, s, a):
            cols = jnp.sum(s * s)
            if w_even:
                cols = cols + jnp.sum(a * a)
            # exact ortho-normalized sum |rfft2(x)|^2
            return 0.5 * (jnp.sum(x * x) + cols * inv_w)

        e_p = energy(p, sp, ap)
        e_t = energy(t, st, at)
        e_d = energy(d, sd, ad)

        ssp = jnp.sqrt(e_d) / (jnp.sqrt(e_p) + jnp.sqrt(e_t) + jnp.float32(eps))
        out = jnp.where(lane == i, ssp, out)          # place sample i's scalar

    o_ref[0] = out                                     # (1, TB) disjoint block


def ssp_loss(pred, target, eps=1e-8):
    """SSP loss (batch mean) of two real (B, C, H, W) tensors."""
    B, C, H, W = pred.shape
    R = C * H
    p2 = pred.reshape(B, R, W)            # merge C,H (lane dim W untouched)
    t2 = target.reshape(B, R, W)

    # Samples per grid step (TB): amortize per-step pipeline overhead while
    # keeping 2 inputs x 2 pipeline buffers x TB*R*W*itemsize under ~8 MiB,
    # comfortably inside the 32 MiB scoped-VMEM default of every generation
    # (v7x has only 64 MiB physical VMEM).
    itemsize = jnp.dtype(pred.dtype).itemsize
    budget = 8 * 1024 * 1024
    cap = max(1, min(8, budget // max(4 * R * W * itemsize, 1)))
    tb = 1
    for cand in range(min(cap, B), 0, -1):
        if B % cand == 0:
            tb = cand
            break
    g = B // tb

    kernel = functools.partial(_ssp_kernel, eps=eps, w=W, tb=tb,
                               w_even=(W % 2 == 0))
    per_sample = pl.pallas_call(
        kernel,
        out_shape=jax.ShapeDtypeStruct((g, 1, tb), jnp.float32),
        grid=(g,),
        in_specs=[
            pl.BlockSpec((tb, R, W), lambda i: (i, 0, 0)),   # pred
            pl.BlockSpec((tb, R, W), lambda i: (i, 0, 0)),   # target
        ],
        # Each grid step owns its own (1, 1, TB) output block -> the batch axis
        # is genuinely independent, so "parallel" is race-free on v7x megacore.
        out_specs=pl.BlockSpec((1, 1, tb), lambda i: (i, 0, 0)),
        compiler_params=pltpu.CompilerParams(
            dimension_semantics=("parallel",)),
    )(p2, t2)
    return jnp.mean(per_sample.reshape(B))


def _ref_loss(p, t, eps=1e-8):
    """Pure-JAX reference mirroring the PyTorch module (per-sample, then mean)."""
    pf = jnp.fft.rfft2(p, axes=(-2, -1), norm="ortho")
    tf = jnp.fft.rfft2(t, axes=(-2, -1), norm="ortho")
    d = jnp.sqrt(jnp.sum(jnp.abs(pf - tf) ** 2, axis=(1, 2, 3)))
    pn = jnp.sqrt(jnp.sum(jnp.abs(pf) ** 2, axis=(1, 2, 3)))
    tn = jnp.sqrt(jnp.sum(jnp.abs(tf) ** 2, axis=(1, 2, 3)))
    return jnp.mean(d / (pn + tn + eps))


if __name__ == "__main__":
    B, C, H, W = 2, 4, 16, 16
    key = jax.random.PRNGKey(0)
    k1, k2 = jax.random.split(key)
    pred = jax.random.normal(k1, (B, C, H, W), dtype=jnp.float32)
    target = jax.random.normal(k2, (B, C, H, W), dtype=jnp.float32)

    loss = jax.jit(ssp_loss)(pred, target)
    jax.block_until_ready(loss)

    ref = _ref_loss(pred, target)
    assert jnp.allclose(loss, ref, atol=1e-4, rtol=1e-4), (float(loss), float(ref))
    print("KERNEL_OK")
</pallas_src>

<mosaic_0001>
module attributes {stable_mosaic.version = 11 : i64} {
  func.func @_ssp_kernel(%arg0: i32, %arg1: memref<2x64x16xf32, #tpu.memory_space<vmem>>, %arg2: memref<2x64x16xf32, #tpu.memory_space<vmem>>, %arg3: memref<1x1x2xf32, #tpu.memory_space<vmem>>) attributes {dimension_semantics = [#tpu.dimension_semantics<parallel>], iteration_bounds = array<i64: 1>, scalar_prefetch = 0 : i64, scratch_operands = 0 : i64, tpu.core_type = #tpu.core_type<tc>, window_params = [{transform_indices = @transform_0, window_bounds = array<i64: 2, 64, 16>}, {transform_indices = @transform_1, window_bounds = array<i64: 2, 64, 16>}, {transform_indices = @transform_2, window_bounds = array<i64: 1, 1, 2>}]} {
    %0 = tpu.iota {dimensions = array<i32: 1>} : vector<1x2xi32>
    %1 = tpu.iota {dimensions = array<i32: 1>} : vector<1x16xi32>
    %c2_i32 = arith.constant 2 : i32
    %c0_i32 = arith.constant 0 : i32
    %2 = arith.cmpi eq, %c2_i32, %c0_i32 : i32
    %c1_i32 = arith.constant 1 : i32
    %3 = arith.select %2, %c1_i32, %c2_i32 : i32
    %4 = vector.broadcast %3 : i32 to vector<1x16xi32>
    %5 = arith.remsi %1, %4 : vector<1x16xi32>
    %c0_i32_0 = arith.constant 0 : i32
    %6 = vector.broadcast %c0_i32_0 : i32 to vector<1x16xi32>
    %7 = arith.cmpi ne, %5, %6 : vector<1x16xi32>
    %c0_i32_1 = arith.constant 0 : i32
    %8 = vector.broadcast %c0_i32_1 : i32 to vector<1x16xi32>
    %9 = arith.cmpi slt, %5, %8 : vector<1x16xi32>
    %c0_i32_2 = arith.constant 0 : i32
    %10 = arith.cmpi slt, %3, %c0_i32_2 : i32
    %11 = vector.broadcast %10 : i1 to vector<1x16xi1>
    %12 = vector.broadcast %11 : vector<1x16xi1> to vector<1x16xi1>
    %13 = arith.xori %9, %12 : vector<1x16xi1>
    %14 = arith.andi %13, %7 : vector<1x16xi1>
    %15 = vector.broadcast %3 : i32 to vector<1x16xi32>
    %16 = arith.addi %5, %15 : vector<1x16xi32>
    %17 = arith.select %14, %16, %5 : vector<1x16xi1>, vector<1x16xi32>
    %c0_i32_3 = arith.constant 0 : i32
    %18 = vector.broadcast %c0_i32_3 : i32 to vector<1x16xi32>
    %19 = arith.cmpi eq, %17, %18 : vector<1x16xi32>
    %cst = arith.constant 1.000000e+00 : f32
    %cst_4 = arith.constant -1.000000e+00 : f32
    %20 = vector.broadcast %cst : f32 to vector<1x16xf32>
    %21 = vector.broadcast %cst_4 : f32 to vector<1x16xf32>
    %22 = arith.select %19, %20, %21 : vector<1x16xi1>, vector<1x16xf32>
    %cst_5 = arith.constant 0.000000e+00 : f32
    %23 = vector.broadcast %cst_5 : f32 to vector<1x2xf32>
    %c0 = arith.constant 0 : index
    %c0_6 = arith.constant 0 : index
    %c0_7 = arith.constant 0 : index
    %24 = vector.load %arg1[%c0, %c0_6, %c0_7] : memref<2x64x16xf32, #tpu.memory_space<vmem>>, vector<1x64x16xf32>
    %25 = vector.shape_cast %24 : vector<1x64x16xf32> to vector<64x16xf32>
    %c0_8 = arith.constant 0 : index
    %c0_9 = arith.constant 0 : index
    %c0_10 = arith.constant 0 : index
    %26 = vector.load %arg2[%c0_8, %c0_9, %c0_10] : memref<2x64x16xf32, #tpu.memory_space<vmem>>, vector<1x64x16xf32>
    %27 = vector.shape_cast %26 : vector<1x64x16xf32> to vector<64x16xf32>
    %28 = arith.subf %25, %27 : vector<64x16xf32>
    %cst_11 = arith.constant dense<0.000000e+00> : vector<64xf32>
    %29 = vector.multi_reduction <add>, %25, %cst_11 [1] : vector<64x16xf32> to vector<64xf32>
    %30 = vector.shape_cast %29 : vector<64xf32> to vector<64x1xf32>
    %cst_12 = arith.constant dense<0.000000e+00> : vector<64xf32>
    %31 = vector.multi_reduction <add>, %27, %cst_12 [1] : vector<64x16xf32> to vector<64xf32>
    %32 = vector.shape_cast %31 : vector<64xf32> to vector<64x1xf32>
    %33 = arith.subf %30, %32 : vector<64x1xf32>
    %34 = vector.broadcast %22 : vector<1x16xf32> to vector<64x16xf32>
    %35 = arith.mulf %25, %34 : vector<64x16xf32>
    %cst_13 = arith.constant dense<0.000000e+00> : vector<64xf32>
    %36 = vector.multi_reduction <add>, %35, %cst_13 [1] : vector<64x16xf32> to vector<64xf32>
    %37 = vector.shape_cast %36 : vector<64xf32> to vector<64x1xf32>
    %38 = vector.broadcast %22 : vector<1x16xf32> to vector<64x16xf32>
    %39 = arith.mulf %27, %38 : vector<64x16xf32>
    %cst_14 = arith.constant dense<0.000000e+00> : vector<64xf32>
    %40 = vector.multi_reduction <add>, %39, %cst_14 [1] : vector<64x16xf32> to vector<64xf32>
    %41 = vector.shape_cast %40 : vector<64xf32> to vector<64x1xf32>
    %42 = arith.subf %37, %41 : vector<64x1xf32>
    %43 = arith.mulf %30, %30 : vector<64x1xf32>
    %44 = vector.shape_cast %43 : vector<64x1xf32> to vector<1x64x1xf32>
    %cst_15 = arith.constant dense<0.000000e+00> : vector<1xf32>
    %45 = vector.multi_reduction <add>, %44, %cst_15 [1, 2] : vector<1x64x1xf32> to vector<1xf32>
    %46 = vector.shape_cast %45 : vector<1xf32> to vector<1x1x1xf32>
    %47 = vector.extract %46[0, 0, 0] : f32 from vector<1x1x1xf32>
    %48 = arith.mulf %37, %37 : vector<64x1xf32>
    %49 = vector.shape_cast %48 : vector<64x1xf32> to vector<1x64x1xf32>
    %cst_16 = arith.constant dense<0.000000e+00> : vector<1xf32>
    %50 = vector.multi_reduction <add>, %49, %cst_16 [1, 2] : vector<1x64x1xf32> to vector<1xf32>
    %51 = vector.shape_cast %50 : vector<1xf32> to vector<1x1x1xf32>
    %52 = vector.extract %51[0, 0, 0] : f32 from vector<1x1x1xf32>
    %53 = arith.addf %47, %52 : f32
    %54 = arith.mulf %25, %25 : vector<64x16xf32>
    %55 = vector.shape_cast %54 : vector<64x16xf32> to vector<1x64x16xf32>
    %cst_17 = arith.constant dense<0.000000e+00> : vector<1xf32>
    %56 = vector.multi_reduction <add>, %55, %cst_17 [1, 2] : vector<1x64x16xf32> to vector<1xf32>
    %57 = vector.shape_cast %56 : vector<1xf32> to vector<1x1x1xf32>
    %58 = vector.extract %57[0, 0, 0] : f32 from vector<1x1x1xf32>
    %cst_18 = arith.constant 6.250000e-02 : f32
    %59 = arith.mulf %53, %cst_18 : f32
    %60 = arith.addf %58, %59 : f32
    %cst_19 = arith.constant 5.000000e-01 : f32
    %61 = arith.mulf %cst_19, %60 : f32
    %62 = arith.mulf %32, %32 : vector<64x1xf32>
    %63 = vector.shape_cast %62 : vector<64x1xf32> to vector<1x64x1xf32>
    %cst_20 = arith.constant dense<0.000000e+00> : vector<1xf32>
    %64 = vector.multi_reduction <add>, %63, %cst_20 [1, 2] : vector<1x64x1xf32> to vector<1xf32>
    %65 = vector.shape_cast %64 : vector<1xf32> to vector<1x1x1xf32>
    %66 = vector.extract %65[0, 0, 0] : f32 from vector<1x1x1xf32>
    %67 = arith.mulf %41, %41 : vector<64x1xf32>
    %68 = vector.shape_cast %67 : vector<64x1xf32> to vector<1x64x1xf32>
    %cst_21 = arith.constant dense<0.000000e+00> : vector<1xf32>
    %69 = vector.multi_reduction <add>, %68, %cst_21 [1, 2] : vector<1x64x1xf32> to vector<1xf32>
    %70 = vector.shape_cast %69 : vector<1xf32> to vector<1x1x1xf32>
    %71 = vector.extract %70[0, 0, 0] : f32 from vector<1x1x1xf32>
    %72 = arith.addf %66, %71 : f32
    %73 = arith.mulf %27, %27 : vector<64x16xf32>
    %74 = vector.shape_cast %73 : vector<64x16xf32> to vector<1x64x16xf32>
    %cst_22 = arith.constant dense<0.000000e+00> : vector<1xf32>
    %75 = vector.multi_reduction <add>, %74, %cst_22 [1, 2] : vector<1x64x16xf32> to vector<1xf32>
    %76 = vector.shape_cast %75 : vector<1xf32> to vector<1x1x1xf32>
    %77 = vector.extract %76[0, 0, 0] : f32 from vector<1x1x1xf32>
    %cst_23 = arith.constant 6.250000e-02 : f32
    %78 = arith.mulf %72, %cst_23 : f32
    %79 = arith.addf %77, %78 : f32
    %cst_24 = arith.constant 5.000000e-01 : f32
    %80 = arith.mulf %cst_24, %79 : f32
    %81 = arith.mulf %33, %33 : vector<64x1xf32>
    %82 = vector.shape_cast %81 : vector<64x1xf32> to vector<1x64x1xf32>
    %cst_25 = arith.constant dense<0.000000e+00> : vector<1xf32>
    %83 = vector.multi_reduction <add>, %82, %cst_25 [1, 2] : vector<1x64x1xf32> to vector<1xf32>
    %84 = vector.shape_cast %83 : vector<1xf32> to vector<1x1x1xf32>
    %85 = vector.extract %84[0, 0, 0] : f32 from vector<1x1x1xf32>
    %86 = arith.mulf %42, %42 : vector<64x1xf32>
    %87 = vector.shape_cast %86 : vector<64x1xf32> to vector<1x64x1xf32>
    %cst_26 = arith.constant dense<0.000000e+00> : vector<1xf32>
    %88 = vector.multi_reduction <add>, %87, %cst_26 [1, 2] : vector<1x64x1xf32> to vector<1xf32>
    %89 = vector.shape_cast %88 : vector<1xf32> to vector<1x1x1xf32>
    %90 = vector.extract %89[0, 0, 0] : f32 from vector<1x1x1xf32>
    %91 = arith.addf %85, %90 : f32
    %92 = arith.mulf %28, %28 : vector<64x16xf32>
    %93 = vector.shape_cast %92 : vector<64x16xf32> to vector<1x64x16xf32>
    %cst_27 = arith.constant dense<0.000000e+00> : vector<1xf32>
    %94 = vector.multi_reduction <add>, %93, %cst_27 [1, 2] : vector<1x64x16xf32> to vector<1xf32>
    %95 = vector.shape_cast %94 : vector<1xf32> to vector<1x1x1xf32>
    %96 = vector.extract %95[0, 0, 0] : f32 from vector<1x1x1xf32>
    %cst_28 = arith.constant 6.250000e-02 : f32
    %97 = arith.mulf %91, %cst_28 : f32
    %98 = arith.addf %96, %97 : f32
    %cst_29 = arith.constant 5.000000e-01 : f32
    %99 = arith.mulf %cst_29, %98 : f32
    %100 = math.sqrt %99 : f32
    %101 = math.sqrt %61 : f32
    %102 = math.sqrt %80 : f32
    %103 = arith.addf %101, %102 : f32
    %cst_30 = arith.constant 9.99999993E-9 : f32
    %104 = arith.addf %103, %cst_30 : f32
    %105 = arith.divf %100, %104 : f32
    %c0_i32_31 = arith.constant 0 : i32
    %106 = vector.broadcast %c0_i32_31 : i32 to vector<1x2xi32>
    %107 = arith.cmpi eq, %0, %106 : vector<1x2xi32>
    %108 = vector.broadcast %105 : f32 to vector<1x2xf32>
    %109 = arith.select %107, %108, %23 : vector<1x2xi1>, vector<1x2xf32>
    %c1 = arith.constant 1 : index
    %c0_32 = arith.constant 0 : index
    %c0_33 = arith.constant 0 : index
    %110 = vector.load %arg1[%c1, %c0_32, %c0_33] : memref<2x64x16xf32, #tpu.memory_space<vmem>>, vector<1x64x16xf32>
    %111 = vector.shape_cast %110 : vector<1x64x16xf32> to vector<64x16xf32>
    %c1_34 = arith.constant 1 : index
    %c0_35 = arith.constant 0 : index
    %c0_36 = arith.constant 0 : index
    %112 = vector.load %arg2[%c1_34, %c0_35, %c0_36] : memref<2x64x16xf32, #tpu.memory_space<vmem>>, vector<1x64x16xf32>
    %113 = vector.shape_cast %112 : vector<1x64x16xf32> to vector<64x16xf32>
    %114 = arith.subf %111, %113 : vector<64x16xf32>
    %cst_37 = arith.constant dense<0.000000e+00> : vector<64xf32>
    %115 = vector.multi_reduction <add>, %111, %cst_37 [1] : vector<64x16xf32> to vector<64xf32>
    %116 = vector.shape_cast %115 : vector<64xf32> to vector<64x1xf32>
    %cst_38 = arith.constant dense<0.000000e+00> : vector<64xf32>
    %117 = vector.multi_reduction <add>, %113, %cst_38 [1] : vector<64x16xf32> to vector<64xf32>
    %118 = vector.shape_cast %117 : vector<64xf32> to vector<64x1xf32>
    %119 = arith.subf %116, %118 : vector<64x1xf32>
    %120 = vector.broadcast %22 : vector<1x16xf32> to vector<64x16xf32>
    %121 = arith.mulf %111, %120 : vector<64x16xf32>
    %cst_39 = arith.constant dense<0.000000e+00> : vector<64xf32>
    %122 = vector.multi_reduction <add>, %121, %cst_39 [1] : vector<64x16xf32> to vector<64xf32>
    %123 = vector.shape_cast %122 : vector<64xf32> to vector<64x1xf32>
    %124 = vector.broadcast %22 : vector<1x16xf32> to vector<64x16xf32>
    %125 = arith.mulf %113, %124 : vector<64x16xf32>
    %cst_40 = arith.constant dense<0.000000e+00> : vector<64xf32>
    %126 = vector.multi_reduction <add>, %125, %cst_40 [1] : vector<64x16xf32> to vector<64xf32>
    %127 = vector.shape_cast %126 : vector<64xf32> to vector<64x1xf32>
    %128 = arith.subf %123, %127 : vector<64x1xf32>
    %129 = arith.mulf %116, %116 : vector<64x1xf32>
    %130 = vector.shape_cast %129 : vector<64x1xf32> to vector<1x64x1xf32>
    %cst_41 = arith.constant dense<0.000000e+00> : vector<1xf32>
    %131 = vector.multi_reduction <add>, %130, %cst_41 [1, 2] : vector<1x64x1xf32> to vector<1xf32>
    %132 = vector.shape_cast %131 : vector<1xf32> to vector<1x1x1xf32>
    %133 = vector.extract %132[0, 0, 0] : f32 from vector<1x1x1xf32>
    %134 = arith.mulf %123, %123 : vector<64x1xf32>
    %135 = vector.shape_cast %134 : vector<64x1xf32> to vector<1x64x1xf32>
    %cst_42 = arith.constant dense<0.000000e+00> : vector<1xf32>
    %136 = vector.multi_reduction <add>, %135, %cst_42 [1, 2] : vector<1x64x1xf32> to vector<1xf32>
    %137 = vector.shape_cast %136 : vector<1xf32> to vector<1x1x1xf32>
    %138 = vector.extract %137[0, 0, 0] : f32 from vector<1x1x1xf32>
    %139 = arith.addf %133, %138 : f32
    %140 = arith.mulf %111, %111 : vector<64x16xf32>
    %141 = vector.shape_cast %140 : vector<64x16xf32> to vector<1x64x16xf32>
    %cst_43 = arith.constant dense<0.000000e+00> : vector<1xf32>
    %142 = vector.multi_reduction <add>, %141, %cst_43 [1, 2] : vector<1x64x16xf32> to vector<1xf32>
    %143 = vector.shape_cast %142 : vector<1xf32> to vector<1x1x1xf32>
    %144 = vector.extract %143[0, 0, 0] : f32 from vector<1x1x1xf32>
    %cst_44 = arith.constant 6.250000e-02 : f32
    %145 = arith.mulf %139, %cst_44 : f32
    %146 = arith.addf %144, %145 : f32
    %cst_45 = arith.constant 5.000000e-01 : f32
    %147 = arith.mulf %cst_45, %146 : f32
    %148 = arith.mulf %118, %118 : vector<64x1xf32>
    %149 = vector.shape_cast %148 : vector<64x1xf32> to vector<1x64x1xf32>
    %cst_46 = arith.constant dense<0.000000e+00> : vector<1xf32>
    %150 = vector.multi_reduction <add>, %149, %cst_46 [1, 2] : vector<1x64x1xf32> to vector<1xf32>
    %151 = vector.shape_cast %150 : vector<1xf32> to vector<1x1x1xf32>
    %152 = vector.extract %151[0, 0, 0] : f32 from vector<1x1x1xf32>
    %153 = arith.mulf %127, %127 : vector<64x1xf32>
    %154 = vector.shape_cast %153 : vector<64x1xf32> to vector<1x64x1xf32>
    %cst_47 = arith.constant dense<0.000000e+00> : vector<1xf32>
    %155 = vector.multi_reduction <add>, %154, %cst_47 [1, 2] : vector<1x64x1xf32> to vector<1xf32>
    %156 = vector.shape_cast %155 : vector<1xf32> to vector<1x1x1xf32>
    %157 = vector.extract %156[0, 0, 0] : f32 from vector<1x1x1xf32>
    %158 = arith.addf %152, %157 : f32
    %159 = arith.mulf %113, %113 : vector<64x16xf32>
    %160 = vector.shape_cast %159 : vector<64x16xf32> to vector<1x64x16xf32>
    %cst_48 = arith.constant dense<0.000000e+00> : vector<1xf32>
    %161 = vector.multi_reduction <add>, %160, %cst_48 [1, 2] : vector<1x64x16xf32> to vector<1xf32>
    %162 = vector.shape_cast %161 : vector<1xf32> to vector<1x1x1xf32>
    %163 = vector.extract %162[0, 0, 0] : f32 from vector<1x1x1xf32>
    %cst_49 = arith.constant 6.250000e-02 : f32
    %164 = arith.mulf %158, %cst_49 : f32
    %165 = arith.addf %163, %164 : f32
    %cst_50 = arith.constant 5.000000e-01 : f32
    %166 = arith.mulf %cst_50, %165 : f32
    %167 = arith.mulf %119, %119 : vector<64x1xf32>
    %168 = vector.shape_cast %167 : vector<64x1xf32> to vector<1x64x1xf32>
    %cst_51 = arith.constant dense<0.000000e+00> : vector<1xf32>
    %169 = vector.multi_reduction <add>, %168, %cst_51 [1, 2] : vector<1x64x1xf32> to vector<1xf32>
    %170 = vector.shape_cast %169 : vector<1xf32> to vector<1x1x1xf32>
    %171 = vector.extract %170[0, 0, 0] : f32 from vector<1x1x1xf32>
    %172 = arith.mulf %128, %128 : vector<64x1xf32>
    %173 = vector.shape_cast %172 : vector<64x1xf32> to vector<1x64x1xf32>
    %cst_52 = arith.constant dense<0.000000e+00> : vector<1xf32>
    %174 = vector.multi_reduction <add>, %173, %cst_52 [1, 2] : vector<1x64x1xf32> to vector<1xf32>
    %175 = vector.shape_cast %174 : vector<1xf32> to vector<1x1x1xf32>
    %176 = vector.extract %175[0, 0, 0] : f32 from vector<1x1x1xf32>
    %177 = arith.addf %171, %176 : f32
    %178 = arith.mulf %114, %114 : vector<64x16xf32>
    %179 = vector.shape_cast %178 : vector<64x16xf32> to vector<1x64x16xf32>
    %cst_53 = arith.constant dense<0.000000e+00> : vector<1xf32>
    %180 = vector.multi_reduction <add>, %179, %cst_53 [1, 2] : vector<1x64x16xf32> to vector<1xf32>
    %181 = vector.shape_cast %180 : vector<1xf32> to vector<1x1x1xf32>
    %182 = vector.extract %181[0, 0, 0] : f32 from vector<1x1x1xf32>
    %cst_54 = arith.constant 6.250000e-02 : f32
    %183 = arith.mulf %177, %cst_54 : f32
    %184 = arith.addf %182, %183 : f32
    %cst_55 = arith.constant 5.000000e-01 : f32
    %185 = arith.mulf %cst_55, %184 : f32
    %186 = math.sqrt %185 : f32
    %187 = math.sqrt %147 : f32
    %188 = math.sqrt %166 : f32
    %189 = arith.addf %187, %188 : f32
    %cst_56 = arith.constant 9.99999993E-9 : f32
    %190 = arith.addf %189, %cst_56 : f32
    %191 = arith.divf %186, %190 : f32
    %c1_i32_57 = arith.constant 1 : i32
    %192 = vector.broadcast %c1_i32_57 : i32 to vector<1x2xi32>
    %193 = arith.cmpi eq, %0, %192 : vector<1x2xi32>
    %194 = vector.broadcast %191 : f32 to vector<1x2xf32>
    %195 = arith.select %193, %194, %109 : vector<1x2xi1>, vector<1x2xf32>
    %c0_58 = arith.constant 0 : index
    %c0_59 = arith.constant 0 : index
    %c0_60 = arith.constant 0 : index
    %196 = vector.load %arg3[%c0_58, %c0_59, %c0_60] : memref<1x1x2xf32, #tpu.memory_space<vmem>>, vector<1x1x2xf32>
    %197 = vector.shape_cast %196 : vector<1x1x2xf32> to vector<1x2xf32>
    %198 = vector.shape_cast %195 : vector<1x2xf32> to vector<1x1x2xf32>
    tpu.vector_store %arg3[%c0_58, %c0_59, %c0_60], %198 {strides = array<i32>} : memref<1x1x2xf32, #tpu.memory_space<vmem>>, vector<1x1x2xf32>,
    return
  }
  func.func @transform_0(%arg0: i32) -> (i32, i32, i32) {
    %c0_i32 = arith.constant 0 : i32
    %c0_i32_0 = arith.constant 0 : i32
    %c0_i32_1 = arith.constant 0 : i32
    return %arg0, %c0_i32, %c0_i32_0 : i32, i32, i32
  }
  func.func @transform_1(%arg0: i32) -> (i32, i32, i32) {
    %c0_i32 = arith.constant 0 : i32
    %c0_i32_0 = arith.constant 0 : i32
    %c0_i32_1 = arith.constant 0 : i32
    return %arg0, %c0_i32, %c0_i32_0 : i32, i32, i32
  }
  func.func @transform_2(%arg0: i32) -> (i32, i32, i32) {
    %c0_i32 = arith.constant 0 : i32
    %c0_i32_0 = arith.constant 0 : i32
    %c0_i32_1 = arith.constant 0 : i32
    return %arg0, %c0_i32, %c0_i32_0 : i32, i32, i32
  }
}

</mosaic_0001>

<llo_original>
// kernel: ssp_loss.1
$region0: #{ssp_loss.1}
  #allocation0 [shape = 'u32[]', space=smem, size = 0x4, offset = 0x4, fixed_abs, tag = 'smem constant byte address 0x4 - core index']
  #allocation1 [shape = 'u32[144,128]{1,0:T(1,128)}', space=vmem, size = 0x12000, scoped, tag = 'internal scratch']
  %s0 = inlined_call_operand.hbm [shape: f32[2,64,16], index: 0, kind: input, shape index: {}]
  %s1 = inlined_call_operand.hbm [shape: f32[2,64,16], index: 1, kind: input, shape index: {}]
  %s2 = inlined_call_operand.vmem [shape: f32[1,1,2], index: 2, kind: output, shape index: {}]
  %s3 = sld [smem:[#allocation0]]
  $region26: #{ssp_loss.1} parent=0
    _
  %s5 = ssub.s32 1, %s3
  %s6 = scalar_select 0, %s5, %s3
  $region1: #{ssp_loss.1} parent=0
    #allocation2 [shape = 'u8[65536]{0}', space=vmem, size = 0x10000, scoped, tag = 'input window, operand 0, single buffered']
    #allocation3 [shape = 's32[1]{0}', space=sflag, size = 0x4, scoped, tag = 'scoped memory for ssp_loss.1']
    #allocation4 [shape = 'u8[65536]{0}', space=vmem, size = 0x10000, scoped, tag = 'input window, operand 1, single buffered']
    #allocation5 [shape = 's32[1]{0}', space=sflag, size = 0x4, scoped, tag = 'scoped memory for ssp_loss.1']
    %7 = vsyncpa [#allocation3], 0
    %8 = vsyncpa [#allocation5], 0
    // Predicated region
    $region2: #{ssp_loss.1} parent=1 // pred_check
      _
    $region3: #{ssp_loss.1} parent=1 // pred_check_branch
      %10 = sbr.rel (0) target = $region5
    $region4: #{ssp_loss.1} parent=1 // pred_region
      %s12 = ssub.s32 2048, 2048
      %13 = vsyncadd [#allocation3], %s12
      %s14 = sshll.u32 [#allocation2], 4
      %s15 = int_to_ptr.vmem [resolvable:$true] %s14
      %20 = dma.hbm_to_vmem [thread:$0]  %s0, 2048, %s15, [#allocation3], 128, 128, 8
    $region5: #{ssp_loss.1} parent=1 // pred_fallthru
      _
    // Predicated region
    $region6: #{ssp_loss.1} parent=1 // pred_check
      _
    $region7: #{ssp_loss.1} parent=1 // pred_check_branch
      %22 = sbr.rel (0) target = $region9
    $region8: #{ssp_loss.1} parent=1 // pred_region
      %s24 = ssub.s32 2048, 2048
      %25 = vsyncadd [#allocation5], %s24
      %s26 = sshll.u32 [#allocation4], 4
      %s27 = int_to_ptr.vmem [resolvable:$true] %s26
      %32 = dma.hbm_to_vmem [thread:$0]  %s1, 2048, %s27, [#allocation5], 128, 128, 8
    $region9: #{ssp_loss.1} parent=1 // pred_fallthru
      _
    // Predicated region
    $region10: #{ssp_loss.1} parent=1 // pred_check
      _
    $region11: #{ssp_loss.1} parent=1 // pred_check_branch
      %34 = sbr.rel (0) target = $region13
    $region12: #{ssp_loss.1} parent=1 // pred_region
      %35 = dma.done [#allocation3], 2048
    $region13: #{ssp_loss.1} parent=1 // pred_fallthru
      _
    // Predicated region
    $region14: #{ssp_loss.1} parent=1 // pred_check
      _
    $region15: #{ssp_loss.1} parent=1 // pred_check_branch
      %37 = sbr.rel (0) target = $region17
    $region16: #{ssp_loss.1} parent=1 // pred_region
      %38 = dma.done [#allocation5], 2048
    $region17: #{ssp_loss.1} parent=1 // pred_fallthru
      _
    %v39 = vlaneseq
    %v40 = vand.u32 %v39, 127
    %vm41 = vcmp.lt.s32.totalorder %v40, 0
    %v42 = vsub.s32 0, %v40
    %v43 = vsel %vm41, %v42, %v40
    %v44 = vshrl.u32 %v43, 1
    %v45 = vand.u32 %v43, 1
    %v46 = vsub.s32 0, %v45
    %v47 = vsel %vm41, %v46, %v45
    %vm48 = vcmp.ne.s32.totalorder %v47, 0
    %vm49 = vcmp.lt.s32.totalorder %v47, 0
    %vm50 = vmand %vm49, %vm48
    %v51 = vadd.s32 %v47, 2
    %v52 = vsel %vm50, %v51, %v47
    %vm53 = vcmp.eq.s32.totalorder %v52, 0
    %v54 = vsel %vm53, 1.0, -1.0
    %v55 = vld [vmem:[#allocation2] sm:$0xff]
    %v56 = vld [vmem:[#allocation2 + $0x8] sm:$0xff]
    %v57 = vld [vmem:[#allocation2 + $0x10] sm:$0xff]
    %v58 = vld [vmem:[#allocation2 + $0x18] sm:$0xff]
    %v59 = vld [vmem:[#allocation2 + $0x20] sm:$0xff]
    %v60 = vld [vmem:[#allocation2 + $0x28] sm:$0xff]
    %v61 = vld [vmem:[#allocation2 + $0x30] sm:$0xff]
    %v62 = vld [vmem:[#allocation2 + $0x38] sm:$0xff]
    %v63 = vld [vmem:[#allocation4] sm:$0xff]
    %v64 = vld [vmem:[#allocation4 + $0x8] sm:$0xff]
    %v65 = vld [vmem:[#allocation4 + $0x10] sm:$0xff]
    %v66 = vld [vmem:[#allocation4 + $0x18] sm:$0xff]
    %v67 = vld [vmem:[#allocation4 + $0x20] sm:$0xff]
    %v68 = vld [vmem:[#allocation4 + $0x28] sm:$0xff]
    %v69 = vld [vmem:[#allocation4 + $0x30] sm:$0xff]
    %v70 = vld [vmem:[#allocation4 + $0x38] sm:$0xff]
    %v71 = vsub.f32 %v55, %v63
    %v72 = vsub.f32 %v56, %v64
    %v73 = vsub.f32 %v57, %v65
    %v74 = vsub.f32 %v58, %v66
    %v75 = vsub.f32 %v59, %v67
    %v76 = vsub.f32 %v60, %v68
    %v77 = vsub.f32 %v61, %v69
    %v78 = vsub.f32 %v62, %v70
    %vm79 = vcmask 130048
    %v80 = vsel %vm79, %v55, 0.0
    %81 = vadd.xlane.f32.xlu0 %v80
    %v82 = vpop.xlane.xlu0 %81
    %v83 = vsel %vm79, %v56, 0.0
    %84 = vadd.xlane.f32.xlu0 %v83
    %v85 = vpop.xlane.xlu0 %84
    %v86 = vsel %vm79, %v57, 0.0
    %87 = vadd.xlane.f32.xlu0 %v86
    %v88 = vpop.xlane.xlu0 %87
    %v89 = vsel %vm79, %v58, 0.0
    %90 = vadd.xlane.f32.xlu0 %v89
    %v91 = vpop.xlane.xlu0 %90
    %v92 = vsel %vm79, %v59, 0.0
    %93 = vadd.xlane.f32.xlu0 %v92
    %v94 = vpop.xlane.xlu0 %93
    %v95 = vsel %vm79, %v60, 0.0
    %96 = vadd.xlane.f32.xlu0 %v95
    %v97 = vpop.xlane.xlu0 %96
    %v98 = vsel %vm79, %v61, 0.0
    %99 = vadd.xlane.f32.xlu0 %v98
    %v100 = vpop.xlane.xlu0 %99
    %v101 = vsel %vm79, %v62, 0.0
    %102 = vadd.xlane.f32.xlu0 %v101
    %v103 = vpop.xlane.xlu0 %102
    %v104 = vsel %vm79, %v63, 0.0
    %105 = vadd.xlane.f32.xlu0 %v104
    %v106 = vpop.xlane.xlu0 %105
    %v107 = vsel %vm79, %v64, 0.0
    %108 = vadd.xlane.f32.xlu0 %v107
    %v109 = vpop.xlane.xlu0 %108
    %v110 = vsel %vm79, %v65, 0.0
    %111 = vadd.xlane.f32.xlu0 %v110
    %v112 = vpop.xlane.xlu0 %111
    %v113 = vsel %vm79, %v66, 0.0
    %114 = vadd.xlane.f32.xlu0 %v113
    %v115 = vpop.xlane.xlu0 %114
    %v116 = vsel %vm79, %v67, 0.0
    %117 = vadd.xlane.f32.xlu0 %v116
    %v118 = vpop.xlane.xlu0 %117
    %v119 = vsel %vm79, %v68, 0.0
    %120 = vadd.xlane.f32.xlu0 %v119
    %v121 = vpop.xlane.xlu0 %120
    %v122 = vsel %vm79, %v69, 0.0
    %123 = vadd.xlane.f32.xlu0 %v122
    %v124 = vpop.xlane.xlu0 %123
    %v125 = vsel %vm79, %v70, 0.0
    %126 = vadd.xlane.f32.xlu0 %v125
    %v127 = vpop.xlane.xlu0 %126
    %v128 = vsub.f32 %v82, %v106
    %v129 = vsub.f32 %v85, %v109
    %v130 = vsub.f32 %v88, %v112
    %v131 = vsub.f32 %v91, %v115
    %v132 = vsub.f32 %v94, %v118
    %v133 = vsub.f32 %v97, %v121
    %v134 = vsub.f32 %v100, %v124
    %v135 = vsub.f32 %v103, %v127
    %v136 = vmul.f32 %v55, %v54
    %v137 = vmul.f32 %v56, %v54
    %v138 = vmul.f32 %v57, %v54
    %v139 = vmul.f32 %v58, %v54
    %v140 = vmul.f32 %v59, %v54
    %v141 = vmul.f32 %v60, %v54
    %v142 = vmul.f32 %v61, %v54
    %v143 = vmul.f32 %v62, %v54
    %v144 = vsel %vm79, %v136, 0.0
    %145 = vadd.xlane.f32.xlu0 %v144
    %v146 = vpop.xlane.xlu0 %145
    %v147 = vsel %vm79, %v137, 0.0
    %148 = vadd.xlane.f32.xlu0 %v147
    %v149 = vpop.xlane.xlu0 %148
    %v150 = vsel %vm79, %v138, 0.0
    %151 = vadd.xlane.f32.xlu0 %v150
    %v152 = vpop.xlane.xlu0 %151
    %v153 = vsel %vm79, %v139, 0.0
    %154 = vadd.xlane.f32.xlu0 %v153
    %v155 = vpop.xlane.xlu0 %154
    %v156 = vsel %vm79, %v140, 0.0
    %157 = vadd.xlane.f32.xlu0 %v156
    %v158 = vpop.xlane.xlu0 %157
    %v159 = vsel %vm79, %v141, 0.0
    %160 = vadd.xlane.f32.xlu0 %v159
    %v161 = vpop.xlane.xlu0 %160
    %v162 = vsel %vm79, %v142, 0.0
    %163 = vadd.xlane.f32.xlu0 %v162
    %v164 = vpop.xlane.xlu0 %163
    %v165 = vsel %vm79, %v143, 0.0
    %166 = vadd.xlane.f32.xlu0 %v165
    %v167 = vpop.xlane.xlu0 %166
    %v168 = vmul.f32 %v63, %v54
    %v169 = vmul.f32 %v64, %v54
    %v170 = vmul.f32 %v65, %v54
    %v171 = vmul.f32 %v66, %v54
    %v172 = vmul.f32 %v67, %v54
    %v173 = vmul.f32 %v68, %v54
    %v174 = vmul.f32 %v69, %v54
    %v175 = vmul.f32 %v70, %v54
    %v176 = vsel %vm79, %v168, 0.0
    %177 = vadd.xlane.f32.xlu0 %v176
    %v178 = vpop.xlane.xlu0 %177
    %v179 = vsel %vm79, %v169, 0.0
    %180 = vadd.xlane.f32.xlu0 %v179
    %v181 = vpop.xlane.xlu0 %180
    %v182 = vsel %vm79, %v170, 0.0
    %183 = vadd.xlane.f32.xlu0 %v182
    %v184 = vpop.xlane.xlu0 %183
    %v185 = vsel %vm79, %v171, 0.0
    %186 = vadd.xlane.f32.xlu0 %v185
    %v187 = vpop.xlane.xlu0 %186
    %v188 = vsel %vm79, %v172, 0.0
    %189 = vadd.xlane.f32.xlu0 %v188
    %v190 = vpop.xlane.xlu0 %189
    %v191 = vsel %vm79, %v173, 0.0
    %192 = vadd.xlane.f32.xlu0 %v191
    %v193 = vpop.xlane.xlu0 %192
    %v194 = vsel %vm79, %v174, 0.0
    %195 = vadd.xlane.f32.xlu0 %v194
    %v196 = vpop.xlane.xlu0 %195
    %v197 = vsel %vm79, %v175, 0.0
    %198 = vadd.xlane.f32.xlu0 %v197
    %v199 = vpop.xlane.xlu0 %198
    %v200 = vsub.f32 %v146, %v178
    %v201 = vsub.f32 %v149, %v181
    %v202 = vsub.f32 %v152, %v184
    %v203 = vsub.f32 %v155, %v187
    %v204 = vsub.f32 %v158, %v190
    %v205 = vsub.f32 %v161, %v193
    %v206 = vsub.f32 %v164, %v196
    %v207 = vsub.f32 %v167, %v199
    %v208 = vmul.f32 %v82, %v82
    %v209 = vmul.f32 %v85, %v85
    %v210 = vmul.f32 %v88, %v88
    %v211 = vmul.f32 %v91, %v91
    %v212 = vmul.f32 %v94, %v94
    %v213 = vmul.f32 %v97, %v97
    %v214 = vmul.f32 %v100, %v100
    %v215 = vmul.f32 %v103, %v103
    %vm216 = vcmask 7168
    %v217 = vsel %vm216, %v208, 0.0
    %v218 = vsel %vm216, %v209, 0.0
    %v219 = vadd.f32 %v217, %v218
    %v220 = vsel %vm216, %v210, 0.0
    %v221 = vadd.f32 %v219, %v220
    %v222 = vsel %vm216, %v211, 0.0
    %v223 = vadd.f32 %v221, %v222
    %v224 = vsel %vm216, %v212, 0.0
    %v225 = vadd.f32 %v223, %v224
    %v226 = vsel %vm216, %v213, 0.0
    %v227 = vadd.f32 %v225, %v226
    %v228 = vsel %vm216, %v214, 0.0
    %v229 = vadd.f32 %v227, %v228
    %v230 = vsel %vm216, %v215, 0.0
    %v231 = vadd.f32 %v229, %v230
    %232 = vadd.xlane.f32.xlu0 %v231
    %v233 = vpop.xlane.xlu0 %232
    %v234 = vrot.slane %v233, 4
    %v235 = vadd.f32 %v233, %v234
    %v236 = vrot.slane %v235, 2
    %v237 = vadd.f32 %v235, %v236
    %v238 = vrot.slane %v237, 1
    %v239 = vadd.f32 %v237, %v238
    %s240 = vtos %v239
    %v241 = vmul.f32 %v146, %v146
    %v242 = vmul.f32 %v149, %v149
    %v243 = vmul.f32 %v152, %v152
    %v244 = vmul.f32 %v155, %v155
    %v245 = vmul.f32 %v158, %v158
    %v246 = vmul.f32 %v161, %v161
    %v247 = vmul.f32 %v164, %v164
    %v248 = vmul.f32 %v167, %v167
    %v249 = vsel %vm216, %v241, 0.0
    %v250 = vsel %vm216, %v242, 0.0
    %v251 = vadd.f32 %v249, %v250
    %v252 = vsel %vm216, %v243, 0.0
    %v253 = vadd.f32 %v251, %v252
    %v254 = vsel %vm216, %v244, 0.0
    %v255 = vadd.f32 %v253, %v254
    %v256 = vsel %vm216, %v245, 0.0
    %v257 = vadd.f32 %v255, %v256
    %v258 = vsel %vm216, %v246, 0.0
    %v259 = vadd.f32 %v257, %v258
    %v260 = vsel %vm216, %v247, 0.0
    %v261 = vadd.f32 %v259, %v260
    %v262 = vsel %vm216, %v248, 0.0
    %v263 = vadd.f32 %v261, %v262
    %264 = vadd.xlane.f32.xlu0 %v263
    %v265 = vpop.xlane.xlu0 %264
    %v266 = vrot.slane %v265, 4
    %v267 = vadd.f32 %v265, %v266
    %v268 = vrot.slane %v267, 2
    %v269 = vadd.f32 %v267, %v268
    %v270 = vrot.slane %v269, 1
    %v271 = vadd.f32 %v269, %v270
    %s272 = vtos %v271
    %s273 = sadd.f32 %s240, %s272
    %v274 = vmul.f32 %v55, %v55
    %v275 = vmul.f32 %v56, %v56
    %v276 = vmul.f32 %v57, %v57
    %v277 = vmul.f32 %v58, %v58
    %v278 = vmul.f32 %v59, %v59
    %v279 = vmul.f32 %v60, %v60
    %v280 = vmul.f32 %v61, %v61
    %v281 = vmul.f32 %v62, %v62
    %v282 = vsel %vm79, %v274, 0.0
    %v283 = vsel %vm79, %v275, 0.0
    %v284 = vadd.f32 %v282, %v283
    %v285 = vsel %vm79, %v276, 0.0
    %v286 = vadd.f32 %v284, %v285
    %v287 = vsel %vm79, %v277, 0.0
    %v288 = vadd.f32 %v286, %v287
    %v289 = vsel %vm79, %v278, 0.0
    %v290 = vadd.f32 %v288, %v289
    %v291 = vsel %vm79, %v279, 0.0
    %v292 = vadd.f32 %v290, %v291
    %v293 = vsel %vm79, %v280, 0.0
    %v294 = vadd.f32 %v292, %v293
    %v295 = vsel %vm79, %v281, 0.0
    %v296 = vadd.f32 %v294, %v295
    %297 = vadd.xlane.f32.xlu0 %v296
    %v298 = vpop.xlane.xlu0 %297
    %v299 = vrot.slane %v298, 4
    %v300 = vadd.f32 %v298, %v299
    %v301 = vrot.slane %v300, 2
    %v302 = vadd.f32 %v300, %v301
    %v303 = vrot.slane %v302, 1
    %v304 = vadd.f32 %v302, %v303
    %s305 = vtos %v304
    %s306 = smul.f32 %s273, 0.0625
    %s307 = sadd.f32 %s305, %s306
    %s308 = smul.f32 %s307, 0.5
    %v309 = vmul.f32 %v106, %v106
    %v310 = vmul.f32 %v109, %v109
    %v311 = vmul.f32 %v112, %v112
    %v312 = vmul.f32 %v115, %v115
    %v313 = vmul.f32 %v118, %v118
    %v314 = vmul.f32 %v121, %v121
    %v315 = vmul.f32 %v124, %v124
    %v316 = vmul.f32 %v127, %v127
    %v317 = vsel %vm216, %v309, 0.0
    %v318 = vsel %vm216, %v310, 0.0
    %v319 = vadd.f32 %v317, %v318
    %v320 = vsel %vm216, %v311, 0.0
    %v321 = vadd.f32 %v319, %v320
    %v322 = vsel %vm216, %v312, 0.0
    %v323 = vadd.f32 %v321, %v322
    %v324 = vsel %vm216, %v313, 0.0
    %v325 = vadd.f32 %v323, %v324
    %v326 = vsel %vm216, %v314, 0.0
    %v327 = vadd.f32 %v325, %v326
    %v328 = vsel %vm216, %v315, 0.0
    %v329 = vadd.f32 %v327, %v328
    %v330 = vsel %vm216, %v316, 0.0
    %v331 = vadd.f32 %v329, %v330
    %332 = vadd.xlane.f32.xlu0 %v331
    %v333 = vpop.xlane.xlu0 %332
    %v334 = vrot.slane %v333, 4
    %v335 = vadd.f32 %v333, %v334
    %v336 = vrot.slane %v335, 2
    %v337 = vadd.f32 %v335, %v336
    %v338 = vrot.slane %v337, 1
    %v339 = vadd.f32 %v337, %v338
    %s340 = vtos %v339
    %v341 = vmul.f32 %v178, %v178
    %v342 = vmul.f32 %v181, %v181
    %v343 = vmul.f32 %v184, %v184
    %v344 = vmul.f32 %v187, %v187
    %v345 = vmul.f32 %v190, %v190
    %v346 = vmul.f32 %v193, %v193
    %v347 = vmul.f32 %v196, %v196
    %v348 = vmul.f32 %v199, %v199
    %v349 = vsel %vm216, %v341, 0.0
    %v350 = vsel %vm216, %v342, 0.0
    %v351 = vadd.f32 %v349, %v350
    %v352 = vsel %vm216, %v343, 0.0
    %v353 = vadd.f32 %v351, %v352
    %v354 = vsel %vm216, %v344, 0.0
    %v355 = vadd.f32 %v353, %v354
    %v356 = vsel %vm216, %v345, 0.0
    %v357 = vadd.f32 %v355, %v356
    %v358 = vsel %vm216, %v346, 0.0
    %v359 = vadd.f32 %v357, %v358
    %v360 = vsel %vm216, %v347, 0.0
    %v361 = vadd.f32 %v359, %v360
    %v362 = vsel %vm216, %v348, 0.0
    %v363 = vadd.f32 %v361, %v362
    %364 = vadd.xlane.f32.xlu0 %v363
    %v365 = vpop.xlane.xlu0 %364
    %v366 = vrot.slane %v365, 4
    %v367 = vadd.f32 %v365, %v366
    %v368 = vrot.slane %v367, 2
    %v369 = vadd.f32 %v367, %v368
    %v370 = vrot.slane %v369, 1
    %v371 = vadd.f32 %v369, %v370
    %s372 = vtos %v371
    %s373 = sadd.f32 %s340, %s372
    %v374 = vmul.f32 %v63, %v63
    %v375 = vmul.f32 %v64, %v64
    %v376 = vmul.f32 %v65, %v65
    %v377 = vmul.f32 %v66, %v66
    %v378 = vmul.f32 %v67, %v67
    %v379 = vmul.f32 %v68, %v68
    %v380 = vmul.f32 %v69, %v69
    %v381 = vmul.f32 %v70, %v70
    %v382 = vsel %vm79, %v374, 0.0
    %v383 = vsel %vm79, %v375, 0.0
    %v384 = vadd.f32 %v382, %v383
    %v385 = vsel %vm79, %v376, 0.0
    %v386 = vadd.f32 %v384, %v385
    %v387 = vsel %vm79, %v377, 0.0
    %v388 = vadd.f32 %v386, %v387
    %v389 = vsel %vm79, %v378, 0.0
    %v390 = vadd.f32 %v388, %v389
    %v391 = vsel %vm79, %v379, 0.0
    %v392 = vadd.f32 %v390, %v391
    %v393 = vsel %vm79, %v380, 0.0
    %v394 = vadd.f32 %v392, %v393
    %v395 = vsel %vm79, %v381, 0.0
    %v396 = vadd.f32 %v394, %v395
    %397 = vadd.xlane.f32.xlu0 %v396
    %v398 = vpop.xlane.xlu0 %397
    %v399 = vrot.slane %v398, 4
    %v400 = vadd.f32 %v398, %v399
    %v401 = vrot.slane %v400, 2
    %v402 = vadd.f32 %v400, %v401
    %v403 = vrot.slane %v402, 1
    %v404 = vadd.f32 %v402, %v403
    %s405 = vtos %v404
    %s406 = smul.f32 %s373, 0.0625
    %s407 = sadd.f32 %s405, %s406
    %s408 = smul.f32 %s407, 0.5
    %v409 = vmul.f32 %v128, %v128
    %v410 = vmul.f32 %v129, %v129
    %v411 = vmul.f32 %v130, %v130
    %v412 = vmul.f32 %v131, %v131
    %v413 = vmul.f32 %v132, %v132
    %v414 = vmul.f32 %v133, %v133
    %v415 = vmul.f32 %v134, %v134
    %v416 = vmul.f32 %v135, %v135
    %v417 = vsel %vm216, %v409, 0.0
    %v418 = vsel %vm216, %v410, 0.0
    %v419 = vadd.f32 %v417, %v418
    %v420 = vsel %vm216, %v411, 0.0
    %v421 = vadd.f32 %v419, %v420
    %v422 = vsel %vm216, %v412, 0.0
    %v423 = vadd.f32 %v421, %v422
    %v424 = vsel %vm216, %v413, 0.0
    %v425 = vadd.f32 %v423, %v424
    %v426 = vsel %vm216, %v414, 0.0
    %v427 = vadd.f32 %v425, %v426
    %v428 = vsel %vm216, %v415, 0.0
    %v429 = vadd.f32 %v427, %v428
    %v430 = vsel %vm216, %v416, 0.0
    %v431 = vadd.f32 %v429, %v430
    %432 = vadd.xlane.f32.xlu0 %v431
    %v433 = vpop.xlane.xlu0 %432
    %v434 = vrot.slane %v433, 4
    %v435 = vadd.f32 %v433, %v434
    %v436 = vrot.slane %v435, 2
    %v437 = vadd.f32 %v435, %v436
    %v438 = vrot.slane %v437, 1
    %v439 = vadd.f32 %v437, %v438
    %s440 = vtos %v439
    %v441 = vmul.f32 %v200, %v200
    %v442 = vmul.f32 %v201, %v201
    %v443 = vmul.f32 %v202, %v202
    %v444 = vmul.f32 %v203, %v203
    %v445 = vmul.f32 %v204, %v204
    %v446 = vmul.f32 %v205, %v205
    %v447 = vmul.f32 %v206, %v206
    %v448 = vmul.f32 %v207, %v207
    %v449 = vsel %vm216, %v441, 0.0
    %v450 = vsel %vm216, %v442, 0.0
    %v451 = vadd.f32 %v449, %v450
    %v452 = vsel %vm216, %v443, 0.0
    %v453 = vadd.f32 %v451, %v452
    %v454 = vsel %vm216, %v444, 0.0
    %v455 = vadd.f32 %v453, %v454
    %v456 = vsel %vm216, %v445, 0.0
    %v457 = vadd.f32 %v455, %v456
    %v458 = vsel %vm216, %v446, 0.0
    %v459 = vadd.f32 %v457, %v458
    %v460 = vsel %vm216, %v447, 0.0
    %v461 = vadd.f32 %v459, %v460
    %v462 = vsel %vm216, %v448, 0.0
    %v463 = vadd.f32 %v461, %v462
    %464 = vadd.xlane.f32.xlu0 %v463
    %v465 = vpop.xlane.xlu0 %464
    %v466 = vrot.slane %v465, 4
    %v467 = vadd.f32 %v465, %v466
    %v468 = vrot.slane %v467, 2
    %v469 = vadd.f32 %v467, %v468
    %v470 = vrot.slane %v469, 1
    %v471 = vadd.f32 %v469, %v470
    %s472 = vtos %v471
    %s473 = sadd.f32 %s440, %s472
    %v474 = vmul.f32 %v71, %v71
    %v475 = vmul.f32 %v72, %v72
    %v476 = vmul.f32 %v73, %v73
    %v477 = vmul.f32 %v74, %v74
    %v478 = vmul.f32 %v75, %v75
    %v479 = vmul.f32 %v76, %v76
    %v480 = vmul.f32 %v77, %v77
    %v481 = vmul.f32 %v78, %v78
    %v482 = vsel %vm79, %v474, 0.0
    %v483 = vsel %vm79, %v475, 0.0
    %v484 = vadd.f32 %v482, %v483
    %v485 = vsel %vm79, %v476, 0.0
    %v486 = vadd.f32 %v484, %v485
    %v487 = vsel %vm79, %v477, 0.0
    %v488 = vadd.f32 %v486, %v487
    %v489 = vsel %vm79, %v478, 0.0
    %v490 = vadd.f32 %v488, %v489
    %v491 = vsel %vm79, %v479, 0.0
    %v492 = vadd.f32 %v490, %v491
    %v493 = vsel %vm79, %v480, 0.0
    %v494 = vadd.f32 %v492, %v493
    %v495 = vsel %vm79, %v481, 0.0
    %v496 = vadd.f32 %v494, %v495
    %497 = vadd.xlane.f32.xlu0 %v496
    %v498 = vpop.xlane.xlu0 %497
    %v499 = vrot.slane %v498, 4
    %v500 = vadd.f32 %v498, %v499
    %v501 = vrot.slane %v500, 2
    %v502 = vadd.f32 %v500, %v501
    %v503 = vrot.slane %v502, 1
    %v504 = vadd.f32 %v502, %v503
    %s505 = vtos %v504
    %s506 = smul.f32 %s473, 0.0625
    %s507 = sadd.f32 %s505, %s506
    %s508 = smul.f32 %s507, 0.5
    %v509 = vstv %s508
    %v510 = vrsqrt.pop %v509
    %v511 = vmul.f32 %v509, %v510
    %vm512 = vcmp.eq.f32.partialorder %v509, inf
    %v513 = vsel %vm512, %v509, %v511
    %vm514 = vcmp.eq.f32.partialorder %v509, 0.0
    %v515 = vand.u32 %v509, 2147483648
    %v516 = vsel %vm514, %v515, %v513
    %s517 = vtos %v516
    %v518 = vstv %s308
    %v519 = vrsqrt.pop %v518
    %v520 = vmul.f32 %v518, %v519
    %vm521 = vcmp.eq.f32.partialorder %v518, inf
    %v522 = vsel %vm521, %v518, %v520
    %vm523 = vcmp.eq.f32.partialorder %v518, 0.0
    %v524 = vand.u32 %v518, 2147483648
    %v525 = vsel %vm523, %v524, %v522
    %s526 = vtos %v525
    %v527 = vstv %s408
    %v528 = vrsqrt.pop %v527
    %v529 = vmul.f32 %v527, %v528
    %vm530 = vcmp.eq.f32.partialorder %v527, inf
    %v531 = vsel %vm530, %v527, %v529
    %vm532 = vcmp.eq.f32.partialorder %v527, 0.0
    %v533 = vand.u32 %v527, 2147483648
    %v534 = vsel %vm532, %v533, %v531
    %s535 = vtos %v534
    %s536 = sadd.f32 %s526, %s535
    %s537 = sadd.f32 %s536, 1e-08
    %v538 = vstv %s537
    %v539 = vrcp.pop %v538
    %s540 = vtos %v539
    %s541 = smul.f32 %s517, %s540
    %vm542 = vcmp.eq.s32.totalorder %v40, 0
    %v543 = vstv %s541
    %v544 = vsel %vm542, %v543, 0.0
    %s545 = scalar_lea.vmem [#allocation2], 64
    %v546 = vld [vmem:[%s545] sm:$0xff]
    %v547 = vld [vmem:[%s545 + $0x8] sm:$0xff]
    %v548 = vld [vmem:[%s545 + $0x10] sm:$0xff]
    %v549 = vld [vmem:[%s545 + $0x18] sm:$0xff]
    %v550 = vld [vmem:[%s545 + $0x20] sm:$0xff]
    %v551 = vld [vmem:[%s545 + $0x28] sm:$0xff]
    %v552 = vld [vmem:[%s545 + $0x30] sm:$0xff]
    %v553 = vld [vmem:[%s545 + $0x38] sm:$0xff]
    %s554 = scalar_lea.vmem [#allocation4], 64
    %v555 = vld [vmem:[%s554] sm:$0xff]
    %v556 = vld [vmem:[%s554 + $0x8] sm:$0xff]
    %v557 = vld [vmem:[%s554 + $0x10] sm:$0xff]
    %v558 = vld [vmem:[%s554 + $0x18] sm:$0xff]
    %v559 = vld [vmem:[%s554 + $0x20] sm:$0xff]
    %v560 = vld [vmem:[%s554 + $0x28] sm:$0xff]
    %v561 = vld [vmem:[%s554 + $0x30] sm:$0xff]
    %v562 = vld [vmem:[%s554 + $0x38] sm:$0xff]
    %v563 = vsub.f32 %v546, %v555
    %v564 = vsub.f32 %v547, %v556
    %v565 = vsub.f32 %v548, %v557
    %v566 = vsub.f32 %v549, %v558
    %v567 = vsub.f32 %v550, %v559
    %v568 = vsub.f32 %v551, %v560
    %v569 = vsub.f32 %v552, %v561
    %v570 = vsub.f32 %v553, %v562
    %v571 = vsel %vm79, %v546, 0.0
    %572 = vadd.xlane.f32.xlu0 %v571
    %v573 = vpop.xlane.xlu0 %572
    %v574 = vsel %vm79, %v547, 0.0
    %575 = vadd.xlane.f32.xlu0 %v574
    %v576 = vpop.xlane.xlu0 %575
    %v577 = vsel %vm79, %v548, 0.0
    %578 = vadd.xlane.f32.xlu0 %v577
    %v579 = vpop.xlane.xlu0 %578
    %v580 = vsel %vm79, %v549, 0.0
    %581 = vadd.xlane.f32.xlu0 %v580
    %v582 = vpop.xlane.xlu0 %581
    %v583 = vsel %vm79, %v550, 0.0
    %584 = vadd.xlane.f32.xlu0 %v583
    %v585 = vpop.xlane.xlu0 %584
    %v586 = vsel %vm79, %v551, 0.0
    %587 = vadd.xlane.f32.xlu0 %v586
    %v588 = vpop.xlane.xlu0 %587
    %v589 = vsel %vm79, %v552, 0.0
    %590 = vadd.xlane.f32.xlu0 %v589
    %v591 = vpop.xlane.xlu0 %590
    %v592 = vsel %vm79, %v553, 0.0
    %593 = vadd.xlane.f32.xlu0 %v592
    %v594 = vpop.xlane.xlu0 %593
    %v595 = vsel %vm79, %v555, 0.0
    %596 = vadd.xlane.f32.xlu0 %v595
    %v597 = vpop.xlane.xlu0 %596
    %v598 = vsel %vm79, %v556, 0.0
    %599 = vadd.xlane.f32.xlu0 %v598
    %v600 = vpop.xlane.xlu0 %599
    %v601 = vsel %vm79, %v557, 0.0
    %602 = vadd.xlane.f32.xlu0 %v601
    %v603 = vpop.xlane.xlu0 %602
    %v604 = vsel %vm79, %v558, 0.0
    %605 = vadd.xlane.f32.xlu0 %v604
    %v606 = vpop.xlane.xlu0 %605
    %v607 = vsel %vm79, %v559, 0.0
    %608 = vadd.xlane.f32.xlu0 %v607
    %v609 = vpop.xlane.xlu0 %608
    %v610 = vsel %vm79, %v560, 0.0
    %611 = vadd.xlane.f32.xlu0 %v610
    %v612 = vpop.xlane.xlu0 %611
    %v613 = vsel %vm79, %v561, 0.0
    %614 = vadd.xlane.f32.xlu0 %v613
    %v615 = vpop.xlane.xlu0 %614
    %v616 = vsel %vm79, %v562, 0.0
    %617 = vadd.xlane.f32.xlu0 %v616
    %v618 = vpop.xlane.xlu0 %617
    %v619 = vsub.f32 %v573, %v597
    %v620 = vsub.f32 %v576, %v600
    %v621 = vsub.f32 %v579, %v603
    %v622 = vsub.f32 %v582, %v606
    %v623 = vsub.f32 %v585, %v609
    %v624 = vsub.f32 %v588, %v612
    %v625 = vsub.f32 %v591, %v615
    %v626 = vsub.f32 %v594, %v618
    %v627 = vmul.f32 %v546, %v54
    %v628 = vmul.f32 %v547, %v54
    %v629 = vmul.f32 %v548, %v54
    %v630 = vmul.f32 %v549, %v54
    %v631 = vmul.f32 %v550, %v54
    %v632 = vmul.f32 %v551, %v54
    %v633 = vmul.f32 %v552, %v54
    %v634 = vmul.f32 %v553, %v54
    %v635 = vsel %vm79, %v627, 0.0
    %636 = vadd.xlane.f32.xlu0 %v635
    %v637 = vpop.xlane.xlu0 %636
    %v638 = vsel %vm79, %v628, 0.0
    %639 = vadd.xlane.f32.xlu0 %v638
    %v640 = vpop.xlane.xlu0 %639
    %v641 = vsel %vm79, %v629, 0.0
    %642 = vadd.xlane.f32.xlu0 %v641
    %v643 = vpop.xlane.xlu0 %642
    %v644 = vsel %vm79, %v630, 0.0
    %645 = vadd.xlane.f32.xlu0 %v644
    %v646 = vpop.xlane.xlu0 %645
    %v647 = vsel %vm79, %v631, 0.0
    %648 = vadd.xlane.f32.xlu0 %v647
    %v649 = vpop.xlane.xlu0 %648
    %v650 = vsel %vm79, %v632, 0.0
    %651 = vadd.xlane.f32.xlu0 %v650
    %v652 = vpop.xlane.xlu0 %651
    %v653 = vsel %vm79, %v633, 0.0
    %654 = vadd.xlane.f32.xlu0 %v653
    %v655 = vpop.xlane.xlu0 %654
    %v656 = vsel %vm79, %v634, 0.0
    %657 = vadd.xlane.f32.xlu0 %v656
    %v658 = vpop.xlane.xlu0 %657
    %v659 = vmul.f32 %v555, %v54
    %v660 = vmul.f32 %v556, %v54
    %v661 = vmul.f32 %v557, %v54
    %v662 = vmul.f32 %v558, %v54
    %v663 = vmul.f32 %v559, %v54
    %v664 = vmul.f32 %v560, %v54
    %v665 = vmul.f32 %v561, %v54
    %v666 = vmul.f32 %v562, %v54
    %v667 = vsel %vm79, %v659, 0.0
    %668 = vadd.xlane.f32.xlu0 %v667
    %v669 = vpop.xlane.xlu0 %668
    %v670 = vsel %vm79, %v660, 0.0
    %671 = vadd.xlane.f32.xlu0 %v670
    %v672 = vpop.xlane.xlu0 %671
    %v673 = vsel %vm79, %v661, 0.0
    %674 = vadd.xlane.f32.xlu0 %v673
    %v675 = vpop.xlane.xlu0 %674
    %v676 = vsel %vm79, %v662, 0.0
    %677 = vadd.xlane.f32.xlu0 %v676
    %v678 = vpop.xlane.xlu0 %677
    %v679 = vsel %vm79, %v663, 0.0
    %680 = vadd.xlane.f32.xlu0 %v679
    %v681 = vpop.xlane.xlu0 %680
    %v682 = vsel %vm79, %v664, 0.0
    %683 = vadd.xlane.f32.xlu0 %v682
    %v684 = vpop.xlane.xlu0 %683
    %v685 = vsel %vm79, %v665, 0.0
    %686 = vadd.xlane.f32.xlu0 %v685
    %v687 = vpop.xlane.xlu0 %686
    %v688 = vsel %vm79, %v666, 0.0
    %689 = vadd.xlane.f32.xlu0 %v688
    %v690 = vpop.xlane.xlu0 %689
    %v691 = vsub.f32 %v637, %v669
    %v692 = vsub.f32 %v640, %v672
    %v693 = vsub.f32 %v643, %v675
    %v694 = vsub.f32 %v646, %v678
    %v695 = vsub.f32 %v649, %v681
    %v696 = vsub.f32 %v652, %v684
    %v697 = vsub.f32 %v655, %v687
    %v698 = vsub.f32 %v658, %v690
    %v699 = vmul.f32 %v573, %v573
    %v700 = vmul.f32 %v576, %v576
    %v701 = vmul.f32 %v579, %v579
    %v702 = vmul.f32 %v582, %v582
    %v703 = vmul.f32 %v585, %v585
    %v704 = vmul.f32 %v588, %v588
    %v705 = vmul.f32 %v591, %v591
    %v706 = vmul.f32 %v594, %v594
    %v707 = vsel %vm216, %v699, 0.0
    %v708 = vsel %vm216, %v700, 0.0
    %v709 = vadd.f32 %v707, %v708
    %v710 = vsel %vm216, %v701, 0.0
    %v711 = vadd.f32 %v709, %v710
    %v712 = vsel %vm216, %v702, 0.0
    %v713 = vadd.f32 %v711, %v712
    %v714 = vsel %vm216, %v703, 0.0
    %v715 = vadd.f32 %v713, %v714
    %v716 = vsel %vm216, %v704, 0.0
    %v717 = vadd.f32 %v715, %v716
    %v718 = vsel %vm216, %v705, 0.0
    %v719 = vadd.f32 %v717, %v718
    %v720 = vsel %vm216, %v706, 0.0
    %v721 = vadd.f32 %v719, %v720
    %722 = vadd.xlane.f32.xlu0 %v721
    %v723 = vpop.xlane.xlu0 %722
    %v724 = vrot.slane %v723, 4
    %v725 = vadd.f32 %v723, %v724
    %v726 = vrot.slane %v725, 2
    %v727 = vadd.f32 %v725, %v726
    %v728 = vrot.slane %v727, 1
    %v729 = vadd.f32 %v727, %v728
    %s730 = vtos %v729
    %v731 = vmul.f32 %v637, %v637
    %v732 = vmul.f32 %v640, %v640
    %v733 = vmul.f32 %v643, %v643
    %v734 = vmul.f32 %v646, %v646
    %v735 = vmul.f32 %v649, %v649
    %v736 = vmul.f32 %v652, %v652
    %v737 = vmul.f32 %v655, %v655
    %v738 = vmul.f32 %v658, %v658
    %v739 = vsel %vm216, %v731, 0.0
    %v740 = vsel %vm216, %v732, 0.0
    %v741 = vadd.f32 %v739, %v740
    %v742 = vsel %vm216, %v733, 0.0
    %v743 = vadd.f32 %v741, %v742
    %v744 = vsel %vm216, %v734, 0.0
    %v745 = vadd.f32 %v743, %v744
    %v746 = vsel %vm216, %v735, 0.0
    %v747 = vadd.f32 %v745, %v746
    %v748 = vsel %vm216, %v736, 0.0
    %v749 = vadd.f32 %v747, %v748
    %v750 = vsel %vm216, %v737, 0.0
    %v751 = vadd.f32 %v749, %v750
    %v752 = vsel %vm216, %v738, 0.0
    %v753 = vadd.f32 %v751, %v752
    %754 = vadd.xlane.f32.xlu0 %v753
    %v755 = vpop.xlane.xlu0 %754
    %v756 = vrot.slane %v755, 4
    %v757 = vadd.f32 %v755, %v756
    %v758 = vrot.slane %v757, 2
    %v759 = vadd.f32 %v757, %v758
    %v760 = vrot.slane %v759, 1
    %v761 = vadd.f32 %v759, %v760
    %s762 = vtos %v761
    %s763 = sadd.f32 %s730, %s762
    %v764 = vmul.f32 %v546, %v546
    %v765 = vmul.f32 %v547, %v547
    %v766 = vmul.f32 %v548, %v548
    %v767 = vmul.f32 %v549, %v549
    %v768 = vmul.f32 %v550, %v550
    %v769 = vmul.f32 %v551, %v551
    %v770 = vmul.f32 %v552, %v552
    %v771 = vmul.f32 %v553, %v553
    %v772 = vsel %vm79, %v764, 0.0
    %v773 = vsel %vm79, %v765, 0.0
    %v774 = vadd.f32 %v772, %v773
    %v775 = vsel %vm79, %v766, 0.0
    %v776 = vadd.f32 %v774, %v775
    %v777 = vsel %vm79, %v767, 0.0
    %v778 = vadd.f32 %v776, %v777
    %v779 = vsel %vm79, %v768, 0.0
    %v780 = vadd.f32 %v778, %v779
    %v781 = vsel %vm79, %v769, 0.0
    %v782 = vadd.f32 %v780, %v781
    %v783 = vsel %vm79, %v770, 0.0
    %v784 = vadd.f32 %v782, %v783
    %v785 = vsel %vm79, %v771, 0.0
    %v786 = vadd.f32 %v784, %v785
    %787 = vadd.xlane.f32.xlu0 %v786
    %v788 = vpop.xlane.xlu0 %787
    %v789 = vrot.slane %v788, 4
    %v790 = vadd.f32 %v788, %v789
    %v791 = vrot.slane %v790, 2
    %v792 = vadd.f32 %v790, %v791
    %v793 = vrot.slane %v792, 1
    %v794 = vadd.f32 %v792, %v793
    %s795 = vtos %v794
    %s796 = smul.f32 %s763, 0.0625
    %s797 = sadd.f32 %s795, %s796
    %s798 = smul.f32 %s797, 0.5
    %v799 = vmul.f32 %v597, %v597
    %v800 = vmul.f32 %v600, %v600
    %v801 = vmul.f32 %v603, %v603
    %v802 = vmul.f32 %v606, %v606
    %v803 = vmul.f32 %v609, %v609
    %v804 = vmul.f32 %v612, %v612
    %v805 = vmul.f32 %v615, %v615
    %v806 = vmul.f32 %v618, %v618
    %v807 = vsel %vm216, %v799, 0.0
    %v808 = vsel %vm216, %v800, 0.0
    %v809 = vadd.f32 %v807, %v808
    %v810 = vsel %vm216, %v801, 0.0
    %v811 = vadd.f32 %v809, %v810
    %v812 = vsel %vm216, %v802, 0.0
    %v813 = vadd.f32 %v811, %v812
    %v814 = vsel %vm216, %v803, 0.0
    %v815 = vadd.f32 %v813, %v814
    %v816 = vsel %vm216, %v804, 0.0
    %v817 = vadd.f32 %v815, %v816
    %v818 = vsel %vm216, %v805, 0.0
    %v819 = vadd.f32 %v817, %v818
    %v820 = vsel %vm216, %v806, 0.0
    %v821 = vadd.f32 %v819, %v820
    %822 = vadd.xlane.f32.xlu0 %v821
    %v823 = vpop.xlane.xlu0 %822
    %v824 = vrot.slane %v823, 4
    %v825 = vadd.f32 %v823, %v824
    %v826 = vrot.slane %v825, 2
    %v827 = vadd.f32 %v825, %v826
    %v828 = vrot.slane %v827, 1
    %v829 = vadd.f32 %v827, %v828
    %s830 = vtos %v829
    %v831 = vmul.f32 %v669, %v669
    %v832 = vmul.f32 %v672, %v672
    %v833 = vmul.f32 %v675, %v675
    %v834 = vmul.f32 %v678, %v678
    %v835 = vmul.f32 %v681, %v681
    %v836 = vmul.f32 %v684, %v684
    %v837 = vmul.f32 %v687, %v687
    %v838 = vmul.f32 %v690, %v690
    %v839 = vsel %vm216, %v831, 0.0
    %v840 = vsel %vm216, %v832, 0.0
    %v841 = vadd.f32 %v839, %v840
    %v842 = vsel %vm216, %v833, 0.0
    %v843 = vadd.f32 %v841, %v842
    %v844 = vsel %vm216, %v834, 0.0
    %v845 = vadd.f32 %v843, %v844
    %v846 = vsel %vm216, %v835, 0.0
    %v847 = vadd.f32 %v845, %v846
    %v848 = vsel %vm216, %v836, 0.0
    %v849 = vadd.f32 %v847, %v848
    %v850 = vsel %vm216, %v837, 0.0
    %v851 = vadd.f32 %v849, %v850
    %v852 = vsel %vm216, %v838, 0.0
    %v853 = vadd.f32 %v851, %v852
    %854 = vadd.xlane.f32.xlu0 %v853
    %v855 = vpop.xlane.xlu0 %854
    %v856 = vrot.slane %v855, 4
    %v857 = vadd.f32 %v855, %v856
    %v858 = vrot.slane %v857, 2
    %v859 = vadd.f32 %v857, %v858
    %v860 = vrot.slane %v859, 1
    %v861 = vadd.f32 %v859, %v860
    %s862 = vtos %v861
    %s863 = sadd.f32 %s830, %s862
    %v864 = vmul.f32 %v555, %v555
    %v865 = vmul.f32 %v556, %v556
    %v866 = vmul.f32 %v557, %v557
    %v867 = vmul.f32 %v558, %v558
    %v868 = vmul.f32 %v559, %v559
    %v869 = vmul.f32 %v560, %v560
    %v870 = vmul.f32 %v561, %v561
    %v871 = vmul.f32 %v562, %v562
    %v872 = vsel %vm79, %v864, 0.0
    %v873 = vsel %vm79, %v865, 0.0
    %v874 = vadd.f32 %v872, %v873
    %v875 = vsel %vm79, %v866, 0.0
    %v876 = vadd.f32 %v874, %v875
    %v877 = vsel %vm79, %v867, 0.0
    %v878 = vadd.f32 %v876, %v877
    %v879 = vsel %vm79, %v868, 0.0
    %v880 = vadd.f32 %v878, %v879
    %v881 = vsel %vm79, %v869, 0.0
    %v882 = vadd.f32 %v880, %v881
    %v883 = vsel %vm79, %v870, 0.0
    %v884 = vadd.f32 %v882, %v883
    %v885 = vsel %vm79, %v871, 0.0
    %v886 = vadd.f32 %v884, %v885
    %887 = vadd.xlane.f32.xlu0 %v886
    %v888 = vpop.xlane.xlu0 %887
    %v889 = vrot.slane %v888, 4
    %v890 = vadd.f32 %v888, %v889
    %v891 = vrot.slane %v890, 2
    %v892 = vadd.f32 %v890, %v891
    %v893 = vrot.slane %v892, 1
    %v894 = vadd.f32 %v892, %v893
    %s895 = vtos %v894
    %s896 = smul.f32 %s863, 0.0625
    %s897 = sadd.f32 %s895, %s896
    %s898 = smul.f32 %s897, 0.5
    %v899 = vmul.f32 %v619, %v619
    %v900 = vmul.f32 %v620, %v620
    %v901 = vmul.f32 %v621, %v621
    %v902 = vmul.f32 %v622, %v622
    %v903 = vmul.f32 %v623, %v623
    %v904 = vmul.f32 %v624, %v624
    %v905 = vmul.f32 %v625, %v625
    %v906 = vmul.f32 %v626, %v626
    %v907 = vsel %vm216, %v899, 0.0
    %v908 = vsel %vm216, %v900, 0.0
    %v909 = vadd.f32 %v907, %v908
    %v910 = vsel %vm216, %v901, 0.0
    %v911 = vadd.f32 %v909, %v910
    %v912 = vsel %vm216, %v902, 0.0
    %v913 = vadd.f32 %v911, %v912
    %v914 = vsel %vm216, %v903, 0.0
    %v915 = vadd.f32 %v913, %v914
    %v916 = vsel %vm216, %v904, 0.0
    %v917 = vadd.f32 %v915, %v916
    %v918 = vsel %vm216, %v905, 0.0
    %v919 = vadd.f32 %v917, %v918
    %v920 = vsel %vm216, %v906, 0.0
    %v921 = vadd.f32 %v919, %v920
    %922 = vadd.xlane.f32.xlu0 %v921
    %v923 = vpop.xlane.xlu0 %922
    %v924 = vrot.slane %v923, 4
    %v925 = vadd.f32 %v923, %v924
    %v926 = vrot.slane %v925, 2
    %v927 = vadd.f32 %v925, %v926
    %v928 = vrot.slane %v927, 1
    %v929 = vadd.f32 %v927, %v928
    %s930 = vtos %v929
    %v931 = vmul.f32 %v691, %v691
    %v932 = vmul.f32 %v692, %v692
    %v933 = vmul.f32 %v693, %v693
    %v934 = vmul.f32 %v694, %v694
    %v935 = vmul.f32 %v695, %v695
    %v936 = vmul.f32 %v696, %v696
    %v937 = vmul.f32 %v697, %v697
    %v938 = vmul.f32 %v698, %v698
    %v939 = vsel %vm216, %v931, 0.0
    %v940 = vsel %vm216, %v932, 0.0
    %v941 = vadd.f32 %v939, %v940
    %v942 = vsel %vm216, %v933, 0.0
    %v943 = vadd.f32 %v941, %v942
    %v944 = vsel %vm216, %v934, 0.0
    %v945 = vadd.f32 %v943, %v944
    %v946 = vsel %vm216, %v935, 0.0
    %v947 = vadd.f32 %v945, %v946
    %v948 = vsel %vm216, %v936, 0.0
    %v949 = vadd.f32 %v947, %v948
    %v950 = vsel %vm216, %v937, 0.0
    %v951 = vadd.f32 %v949, %v950
    %v952 = vsel %vm216, %v938, 0.0
    %v953 = vadd.f32 %v951, %v952
    %954 = vadd.xlane.f32.xlu0 %v953
    %v955 = vpop.xlane.xlu0 %954
    %v956 = vrot.slane %v955, 4
    %v957 = vadd.f32 %v955, %v956
    %v958 = vrot.slane %v957, 2
    %v959 = vadd.f32 %v957, %v958
    %v960 = vrot.slane %v959, 1
    %v961 = vadd.f32 %v959, %v960
    %s962 = vtos %v961
    %s963 = sadd.f32 %s930, %s962
    %v964 = vmul.f32 %v563, %v563
    %v965 = vmul.f32 %v564, %v564
    %v966 = vmul.f32 %v565, %v565
    %v967 = vmul.f32 %v566, %v566
    %v968 = vmul.f32 %v567, %v567
    %v969 = vmul.f32 %v568, %v568
    %v970 = vmul.f32 %v569, %v569
    %v971 = vmul.f32 %v570, %v570
    %v972 = vsel %vm79, %v964, 0.0
    %v973 = vsel %vm79, %v965, 0.0
    %v974 = vadd.f32 %v972, %v973
    %v975 = vsel %vm79, %v966, 0.0
    %v976 = vadd.f32 %v974, %v975
    %v977 = vsel %vm79, %v967, 0.0
    %v978 = vadd.f32 %v976, %v977
    %v979 = vsel %vm79, %v968, 0.0
    %v980 = vadd.f32 %v978, %v979
    %v981 = vsel %vm79, %v969, 0.0
    %v982 = vadd.f32 %v980, %v981
    %v983 = vsel %vm79, %v970, 0.0
    %v984 = vadd.f32 %v982, %v983
    %v985 = vsel %vm79, %v971, 0.0
    %v986 = vadd.f32 %v984, %v985
    %987 = vadd.xlane.f32.xlu0 %v986
    %v988 = vpop.xlane.xlu0 %987
    %v989 = vrot.slane %v988, 4
    %v990 = vadd.f32 %v988, %v989
    %v991 = vrot.slane %v990, 2
    %v992 = vadd.f32 %v990, %v991
    %v993 = vrot.slane %v992, 1
    %v994 = vadd.f32 %v992, %v993
    %s995 = vtos %v994
    %s996 = smul.f32 %s963, 0.0625
    %s997 = sadd.f32 %s995, %s996
    %s998 = smul.f32 %s997, 0.5
    %v999 = vstv %s998
    %v1000 = vrsqrt.pop %v999
    %v1001 = vmul.f32 %v999, %v1000
    %vm1002 = vcmp.eq.f32.partialorder %v999, inf
    %v1003 = vsel %vm1002, %v999, %v1001
    %vm1004 = vcmp.eq.f32.partialorder %v999, 0.0
    %v1005 = vand.u32 %v999, 2147483648
    %v1006 = vsel %vm1004, %v1005, %v1003
    %s1007 = vtos %v1006
    %v1008 = vstv %s798
    %v1009 = vrsqrt.pop %v1008
    %v1010 = vmul.f32 %v1008, %v1009
    %vm1011 = vcmp.eq.f32.partialorder %v1008, inf
    %v1012 = vsel %vm1011, %v1008, %v1010
    %vm1013 = vcmp.eq.f32.partialorder %v1008, 0.0
    %v1014 = vand.u32 %v1008, 2147483648
    %v1015 = vsel %vm1013, %v1014, %v1012
    %s1016 = vtos %v1015
    %v1017 = vstv %s898
    %v1018 = vrsqrt.pop %v1017
    %v1019 = vmul.f32 %v1017, %v1018
    %vm1020 = vcmp.eq.f32.partialorder %v1017, inf
    %v1021 = vsel %vm1020, %v1017, %v1019
    %vm1022 = vcmp.eq.f32.partialorder %v1017, 0.0
    %v1023 = vand.u32 %v1017, 2147483648
    %v1024 = vsel %vm1022, %v1023, %v1021
    %s1025 = vtos %v1024
    %s1026 = sadd.f32 %s1016, %s1025
    %s1027 = sadd.f32 %s1026, 1e-08
    %v1028 = vstv %s1027
    %v1029 = vrcp.pop %v1028
    %s1030 = vtos %v1029
    %s1031 = smul.f32 %s1007, %s1030
    %vm1032 = vcmp.eq.s32.totalorder %v40, 1
    %v1033 = vstv %s1031
    %v1034 = vsel %vm1032, %v1033, %v544
    %vm1035 = vcmask 8192
    %1036 = vst.msk [vmem:[%s2] sm:$0x1] %vm1035, %v1034
    // Predicated region
    $region18: #{ssp_loss.1} parent=1 // pred_check
      _
    $region19: #{ssp_loss.1} parent=1 // pred_check_branch
      %1038 = sbr.rel (0) target = $region21
    $region20: #{ssp_loss.1} parent=1 // pred_region
      _
    $region21: #{ssp_loss.1} parent=1 // pred_fallthru
      _
    // Predicated region
    $region22: #{ssp_loss.1} parent=1 // pred_check
      _
    $region23: #{ssp_loss.1} parent=1 // pred_check_branch
      %1040 = sbr.rel (0) target = $region25
    $region24: #{ssp_loss.1} parent=1 // pred_region
      _
    $region25: #{ssp_loss.1} parent=1 // pred_fallthru
      _
    %1041 = vsyncpa [#allocation3], 1
    %1042 = vsyncpa [#allocation5], 1

</llo_original>
